<compile_context>
chip_gen: v7x
topology: tpu7x:2x2x1
jax: 0.10.0
libtpu: 0.0.40
codegen_flags: <defaults>
</compile_context>

<pallas_src>
import jax
import jax.numpy as jnp
from jax.experimental import pallas as pl
from jax.experimental.pallas import tpu as pltpu

LANES = 128          # lane axis width
SUBLANES = 8         # sublane granularity
MAX_BLOCK_M = 4096   # 4096 x 128 x 4 B = 2 MiB per-input tile (v5e-safe)
NUM_SPLITS = 2       # leading "parallel" grid axis (dual-TC on v7x)


def _round_up(x, m):
    return ((x + m - 1) // m) * m


def _cdiv(a, b):
    return (a + b - 1) // b


def _mse_kernel(x_ref, y_ref, out_ref, acc_ref):
    """Grid = (NUM_SPLITS, steps). Accumulates sum((x-y)^2) per split.

    Per-step work is elementwise (VPU-only) accumulation into a VMEM block;
    the expensive full reduce + broadcast happens once per split at the last
    reduction step.
    """
    step = pl.program_id(1)

    @pl.when(step == 0)
    def _():
        acc_ref[...] = jnp.zeros_like(acc_ref)

    d = x_ref[...].astype(jnp.float32) - y_ref[...].astype(jnp.float32)
    acc_ref[...] += d * d

    @pl.when(step == pl.num_programs(1) - 1)
    def _():
        partial = jnp.sum(acc_ref[...])
        # Lane-dense (8,128) output block uniformly filled with this split's
        # partial sum; the wrapper picks one element per split and finishes.
        out_ref[...] = jnp.full((SUBLANES, LANES), partial, dtype=jnp.float32)


def _identity_transform(x):
    # nn.Identity() — explicit hook mirroring the module structure.
    return x


def matching_loss(inp, tgt):
    """MatchingLoss(criterion=MSELoss(), transform=Identity()) forward."""
    assert inp.shape == tgt.shape, "input/target shapes must match"
    x = _identity_transform(inp)
    y = _identity_transform(tgt)

    total = x.size  # true element count (padding contributes 0 to the sum)

    x1 = jnp.ravel(x)
    y1 = jnp.ravel(y)

    # Pad the flattened slab so it splits evenly into NUM_SPLITS streams of
    # (steps x block_m x 128) tiles.
    rows_needed = _cdiv(total, LANES)
    rows_per_split = _round_up(_cdiv(rows_needed, NUM_SPLITS), SUBLANES)
    block_m = min(MAX_BLOCK_M, rows_per_split)
    rows_per_split = _round_up(rows_per_split, block_m)
    rows_total = rows_per_split * NUM_SPLITS
    padded_total = rows_total * LANES

    pad = padded_total - total
    if pad:
        x1 = jnp.pad(x1, (0, pad))
        y1 = jnp.pad(y1, (0, pad))

    x2 = x1.reshape(rows_total, LANES)
    y2 = y1.reshape(rows_total, LANES)

    steps = rows_per_split // block_m
    grid = (NUM_SPLITS, steps)

    def in_map(p, i):
        return (p * steps + i, 0)

    in_bytes = (jnp.dtype(x2.dtype).itemsize + jnp.dtype(y2.dtype).itemsize)
    cost = pl.CostEstimate(
        flops=3 * padded_total,
        transcendentals=0,
        bytes_accessed=padded_total * in_bytes
        + NUM_SPLITS * SUBLANES * LANES * 4,
    )

    out = pl.pallas_call(
        _mse_kernel,
        out_shape=jax.ShapeDtypeStruct((NUM_SPLITS * SUBLANES, LANES),
                                       jnp.float32),
        grid_spec=pltpu.PrefetchScalarGridSpec(
            num_scalar_prefetch=0,
            grid=grid,
            in_specs=[
                pl.BlockSpec((block_m, LANES), in_map),
                pl.BlockSpec((block_m, LANES), in_map),
            ],
            out_specs=pl.BlockSpec((SUBLANES, LANES), lambda p, i: (p, 0)),
            scratch_shapes=[pltpu.VMEM((block_m, LANES), jnp.float32)],
        ),
        compiler_params=pltpu.CompilerParams(
            dimension_semantics=("parallel", "arbitrary"),
        ),
        cost_estimate=cost,
    )(x2, y2)

    # Each split's (8,128) block holds its partial sum (broadcast-filled).
    partials = out.reshape(NUM_SPLITS, SUBLANES, LANES)[:, 0, 0]
    return jnp.sum(partials) / jnp.float32(total)


if __name__ == "__main__":
    key = jax.random.PRNGKey(0)
    k1, k2 = jax.random.split(key)
    # NCHW, matching a small PyTorch-style input: batch=2, channels=4, 16x16.
    inp = jax.random.normal(k1, (2, 4, 16, 16), dtype=jnp.float32)
    tgt = jax.random.normal(k2, (2, 4, 16, 16), dtype=jnp.float32)

    loss = jax.jit(matching_loss)(inp, tgt)
    jax.block_until_ready(loss)

    # Reference check against plain-JAX MSE (same semantics as nn.MSELoss()).
    ref = jnp.mean((inp - tgt) ** 2)
    assert jnp.allclose(loss, ref, rtol=1e-5, atol=1e-6), (loss, ref)

    # Also exercise a padded / larger shape to cover the big-tile + padding path.
    k3, k4 = jax.random.split(k1)
    a = jax.random.normal(k3, (3, 5, 33, 47), dtype=jnp.float32)  # 23265 elems
    b = jax.random.normal(k4, (3, 5, 33, 47), dtype=jnp.float32)
    loss2 = jax.jit(matching_loss)(a, b)
    jax.block_until_ready(loss2)
    ref2 = jnp.mean((a - b) ** 2)
    assert jnp.allclose(loss2, ref2, rtol=1e-5, atol=1e-6), (loss2, ref2)

    print("KERNEL_OK")
</pallas_src>

<mosaic_0001>
module attributes {stable_mosaic.version = 11 : i64} {
  func.func @_mse_kernel(%arg0: i32, %arg1: i32, %arg2: memref<8x128xf32, #tpu.memory_space<vmem>>, %arg3: memref<8x128xf32, #tpu.memory_space<vmem>>, %arg4: memref<8x128xf32, #tpu.memory_space<vmem>>, %arg5: memref<8x128xf32, #tpu.memory_space<vmem>>) attributes {dimension_semantics = [#tpu.dimension_semantics<parallel>, #tpu.dimension_semantics<arbitrary>], iteration_bounds = array<i64: 2, 1>, scalar_prefetch = 0 : i64, scratch_operands = 1 : i64, tpu.core_type = #tpu.core_type<tc>, window_params = [{transform_indices = @transform_0, window_bounds = array<i64: 8, 128>}, {transform_indices = @transform_1, window_bounds = array<i64: 8, 128>}, {transform_indices = @transform_2, window_bounds = array<i64: 8, 128>}]} {
    %c0_i32 = arith.constant 0 : i32
    %0 = arith.cmpi eq, %arg1, %c0_i32 : i32
    %1 = arith.extui %0 : i1 to i32
    %c0_i32_0 = arith.constant 0 : i32
    %2 = arith.cmpi ne, %1, %c0_i32_0 : i32
    scf.if %2 {
      %cst = arith.constant 0.000000e+00 : f32
      %13 = vector.broadcast %cst : f32 to vector<8x128xf32>
      %c0_10 = arith.constant 0 : index
      %c0_11 = arith.constant 0 : index
      %14 = vector.load %arg5[%c0_10, %c0_11] : memref<8x128xf32, #tpu.memory_space<vmem>>, vector<8x128xf32>
      tpu.vector_store %arg5[%c0_10, %c0_11], %13 {strides = array<i32>} : memref<8x128xf32, #tpu.memory_space<vmem>>, vector<8x128xf32>,
    } else {
    }
    %c0 = arith.constant 0 : index
    %c0_1 = arith.constant 0 : index
    %3 = vector.load %arg2[%c0, %c0_1] : memref<8x128xf32, #tpu.memory_space<vmem>>, vector<8x128xf32>
    %c0_2 = arith.constant 0 : index
    %c0_3 = arith.constant 0 : index
    %4 = vector.load %arg3[%c0_2, %c0_3] : memref<8x128xf32, #tpu.memory_space<vmem>>, vector<8x128xf32>
    %5 = arith.subf %3, %4 : vector<8x128xf32>
    %c0_4 = arith.constant 0 : index
    %c0_5 = arith.constant 0 : index
    %6 = vector.load %arg5[%c0_4, %c0_5] : memref<8x128xf32, #tpu.memory_space<vmem>>, vector<8x128xf32>
    %7 = arith.mulf %5, %5 : vector<8x128xf32>
    %8 = arith.addf %6, %7 : vector<8x128xf32>
    %c0_6 = arith.constant 0 : index
    %c0_7 = arith.constant 0 : index
    %9 = vector.load %arg5[%c0_6, %c0_7] : memref<8x128xf32, #tpu.memory_space<vmem>>, vector<8x128xf32>
    tpu.vector_store %arg5[%c0_6, %c0_7], %8 {strides = array<i32>} : memref<8x128xf32, #tpu.memory_space<vmem>>, vector<8x128xf32>,
    %c0_i32_8 = arith.constant 0 : i32
    %10 = arith.cmpi eq, %arg1, %c0_i32_8 : i32
    %11 = arith.extui %10 : i1 to i32
    %c0_i32_9 = arith.constant 0 : i32
    %12 = arith.cmpi ne, %11, %c0_i32_9 : i32
    scf.if %12 {
      %c0_10 = arith.constant 0 : index
      %c0_11 = arith.constant 0 : index
      %13 = vector.load %arg5[%c0_10, %c0_11] : memref<8x128xf32, #tpu.memory_space<vmem>>, vector<8x128xf32>
      %14 = vector.shape_cast %13 : vector<8x128xf32> to vector<1x8x128xf32>
      %cst = arith.constant dense<0.000000e+00> : vector<1xf32>
      %15 = vector.multi_reduction <add>, %14, %cst [1, 2] : vector<1x8x128xf32> to vector<1xf32>
      %16 = vector.shape_cast %15 : vector<1xf32> to vector<1x1x1xf32>
      %17 = vector.extract %16[0, 0, 0] : f32 from vector<1x1x1xf32>
      %18 = vector.broadcast %17 : f32 to vector<8x128xf32>
      %c0_12 = arith.constant 0 : index
      %c0_13 = arith.constant 0 : index
      %19 = vector.load %arg4[%c0_12, %c0_13] : memref<8x128xf32, #tpu.memory_space<vmem>>, vector<8x128xf32>
      tpu.vector_store %arg4[%c0_12, %c0_13], %18 {strides = array<i32>} : memref<8x128xf32, #tpu.memory_space<vmem>>, vector<8x128xf32>,
    } else {
    }
    return
  }
  func.func @transform_0(%arg0: i32, %arg1: i32) -> (i32, i32) {
    %c1_i32 = arith.constant 1 : i32
    %0 = arith.muli %arg0, %c1_i32 : i32
    %1 = arith.addi %0, %arg1 : i32
    %c0_i32 = arith.constant 0 : i32
    %c0_i32_0 = arith.constant 0 : i32
    return %1, %c0_i32 : i32, i32
  }
  func.func @transform_1(%arg0: i32, %arg1: i32) -> (i32, i32) {
    %c1_i32 = arith.constant 1 : i32
    %0 = arith.muli %arg0, %c1_i32 : i32
    %1 = arith.addi %0, %arg1 : i32
    %c0_i32 = arith.constant 0 : i32
    %c0_i32_0 = arith.constant 0 : i32
    return %1, %c0_i32 : i32, i32
  }
  func.func @transform_2(%arg0: i32, %arg1: i32) -> (i32, i32) {
    %c0_i32 = arith.constant 0 : i32
    %c0_i32_0 = arith.constant 0 : i32
    return %arg0, %c0_i32 : i32, i32
  }
}

</mosaic_0001>

<llo_original>
// kernel: matching_loss.1
$region0: #{matching_loss.1}
  #allocation0 [shape = 'u32[]', space=smem, size = 0x4, offset = 0x4, fixed_abs, tag = 'smem constant byte address 0x4 - core index']
  #allocation1 [shape = 'u32[144,128]{1,0:T(1,128)}', space=vmem, size = 0x12000, scoped, tag = 'internal scratch']
  #allocation2 [shape = 'f32[8,128]{1,0:T(8,128)}', space=vmem, size = 0x1000, scoped, tag = 'scratch operand']
  %s0 = inlined_call_operand.vmem [shape: f32[16,128], index: 0, kind: input, shape index: {}]
  %s1 = inlined_call_operand.vmem [shape: f32[16,128], index: 1, kind: input, shape index: {}]
  %s2 = inlined_call_operand.vmem [shape: f32[16,128], index: 2, kind: output, shape index: {}]
  %s3 = sld [smem:[#allocation0]]
  $region49: #{matching_loss.1} parent=0
    _
  %s5 = ssub.s32 1, %s3
  %s6 = scalar_select 0, %s5, %s3
  loop: start=0, step=1, limit=4
  $region2: #{matching_loss.1} parent=0 // loop_pre_header
    _
  $region3: #{matching_loss.1} parent=0 // loop_header
    %s8 = sphi 0, %s12
    %p9 = scmp.ge.s32.totalorder %s8, 4
    %s15 = sphi 0, %s27
    %s16 = sphi 0, %s23
    %s17 = sphi 0, %s15
    %s18 = sphi 0, %s16
    %s19 = sphi 0, %s17
    %s20 = sphi 0, %s18
    %s32 = sphi 0, %s34
    %s35 = sphi 0, %s32
    %s36 = sphi 0, %s35
    %s52 = sphi 0, %s36
    %s60 = sphi 0, %s62
    %s63 = sphi 0, %s60
    %s64 = sphi 0, %s63
    %s80 = sphi 0, %s64
    %s86 = sphi 0, %s88
    %s89 = sphi 0, %s86
    %s90 = sphi 0, %s89
    %s106 = sphi 0, %s90
  $region4: #{matching_loss.1} parent=0 // loop_header_branch
    %11 = sbr.rel (%p9) target = $region8
  $region5: #{matching_loss.1} parent=0 // loop_body
    %s13 = ssub.s32 %s8, 1
    %s14 = ssub.s32 %s8, 2
    %s21 = sadd.s32 1, %s16
    %p22 = scmp.ge.s32.totalorder %s21, 1
    %s23 = scalar_select %p22, 0, %s21
    %s24 = sadd.s32 1, %s15
    %s25 = scalar_select %p22, %s24, %s15
    %p26 = scmp.ge.s32.totalorder %s25, 2
    %s27 = scalar_select %p26, 0, %s25
    %s28 = sadd.s32 %s15, %s16
    %s29 = sadd.s32 %s27, %s23
    %s30 = ssub.s32 %s28, %s29
    %p31 = scmp.eq.s32.totalorder %s30, 0
    %s33 = sadd.s32 %s32, 1
    %s34 = scalar_select %p31, %s32, %s33
    %p37 = pneg %p31
    %p38 = scmp.eq.s32.totalorder %s8, 1
    %p39 = por %p37, %p38
    %p40 = scmp.ne.s32.totalorder %s32, %s35
    %p41 = scmp.eq.s32.totalorder %s8, 0
    %p42 = por %p40, %p41
    %p43 = scmp.ne.s32.totalorder %s32, %s35
    %p44 = scmp.eq.s32.totalorder %s13, 1
    %p45 = por %p43, %p44
    %p46 = scmp.ne.s32.totalorder %s35, %s36
    %p47 = scmp.eq.s32.totalorder %s13, 0
    %p48 = por %p46, %p47
    %p49 = scmp.ne.s32.totalorder %s35, %s36
    %p50 = scmp.eq.s32.totalorder %s14, 1
    %p51 = por %p49, %p50
    %p53 = scmp.ne.s32.totalorder %s36, %s52
    %p54 = scmp.eq.s32.totalorder %s14, 0
    %p55 = por %p53, %p54
    %s56 = sadd.s32 %s15, %s16
    %s57 = sadd.s32 %s27, %s23
    %s58 = ssub.s32 %s56, %s57
    %p59 = scmp.eq.s32.totalorder %s58, 0
    %s61 = sadd.s32 %s60, 1
    %s62 = scalar_select %p59, %s60, %s61
    %p65 = pneg %p59
    %p66 = scmp.eq.s32.totalorder %s8, 1
    %p67 = por %p65, %p66
    %p68 = scmp.ne.s32.totalorder %s60, %s63
    %p69 = scmp.eq.s32.totalorder %s8, 0
    %p70 = por %p68, %p69
    %p71 = scmp.ne.s32.totalorder %s60, %s63
    %p72 = scmp.eq.s32.totalorder %s13, 1
    %p73 = por %p71, %p72
    %p74 = scmp.ne.s32.totalorder %s63, %s64
    %p75 = scmp.eq.s32.totalorder %s13, 0
    %p76 = por %p74, %p75
    %p77 = scmp.ne.s32.totalorder %s63, %s64
    %p78 = scmp.eq.s32.totalorder %s14, 1
    %p79 = por %p77, %p78
    %p81 = scmp.ne.s32.totalorder %s64, %s80
    %p82 = scmp.eq.s32.totalorder %s14, 0
    %p83 = por %p81, %p82
    %s84 = ssub.s32 %s15, %s27
    %p85 = scmp.eq.s32.totalorder %s84, 0
    %s87 = sadd.s32 %s86, 1
    %s88 = scalar_select %p85, %s86, %s87
    %p91 = pneg %p85
    %p92 = scmp.eq.s32.totalorder %s8, 1
    %p93 = por %p91, %p92
    %p94 = scmp.ne.s32.totalorder %s86, %s89
    %p95 = scmp.eq.s32.totalorder %s8, 0
    %p96 = por %p94, %p95
    %p97 = scmp.ne.s32.totalorder %s86, %s89
    %p98 = scmp.eq.s32.totalorder %s13, 1
    %p99 = por %p97, %p98
    %p100 = scmp.ne.s32.totalorder %s89, %s90
    %p101 = scmp.eq.s32.totalorder %s13, 0
    %p102 = por %p100, %p101
    %p103 = scmp.ne.s32.totalorder %s89, %s90
    %p104 = scmp.eq.s32.totalorder %s14, 1
    %p105 = por %p103, %p104
    %p107 = scmp.ne.s32.totalorder %s90, %s106
    %p108 = scmp.eq.s32.totalorder %s14, 0
    %p109 = por %p107, %p108
    %p110 = scmp.le.s32.totalorder 1, %s8
    %p111 = scmp.lt.s32.totalorder %s8, 3
    %p112 = pnand %p110, %p111
    %p113 = pneg %p112
    // Predicated region
    $region9: #{matching_loss.1} parent=5 // pred_check
      _
    $region10: #{matching_loss.1} parent=5 // pred_check_branch
      %115 = sbr.rel (%p112) target = $region12
    $region11: #{matching_loss.1} parent=5 // pred_region
      %s116 = ssub.s32 %s8, 1
    $region12: #{matching_loss.1} parent=5 // pred_fallthru
      _
    %p117 = scmp.lt.s32.totalorder %s8, 2
    // Predicated region
    $region13: #{matching_loss.1} parent=5 // pred_check
      %p118 = pneg %p117
    $region14: #{matching_loss.1} parent=5 // pred_check_branch
      %120 = sbr.rel (%p118) target = $region16
    $region15: #{matching_loss.1} parent=5 // pred_region
      // Predicated region
      $region17: #{matching_loss.1} parent=15 // pred_check
        %p121 = pneg %p42
      $region18: #{matching_loss.1} parent=15 // pred_check_branch
        %123 = sbr.rel (%p121) target = $region20
      $region19: #{matching_loss.1} parent=15 // pred_region
        %s124 = sadd.s32 %s15, %s16
        %p125 = scmp.lt.s32.totalorder %s124, 1
        %s126 = scalar_select %p125, %s124, 1
        %s127 = smul.addr %s126, 8
        %s128 = scalar_lea.vmem %s0, %s127
        %s129 = sadd.s32 %s15, %s16
      $region20: #{matching_loss.1} parent=15 // pred_fallthru
        _
      // Predicated region
      $region21: #{matching_loss.1} parent=15 // pred_check
        %p130 = pneg %p70
      $region22: #{matching_loss.1} parent=15 // pred_check_branch
        %132 = sbr.rel (%p130) target = $region24
      $region23: #{matching_loss.1} parent=15 // pred_region
        %s133 = sadd.s32 %s15, %s16
        %p134 = scmp.lt.s32.totalorder %s133, 1
        %s135 = scalar_select %p134, %s133, 1
        %s136 = smul.addr %s135, 8
        %s137 = scalar_lea.vmem %s1, %s136
        %s138 = sadd.s32 %s15, %s16
      $region24: #{matching_loss.1} parent=15 // pred_fallthru
        _
    $region16: #{matching_loss.1} parent=5 // pred_fallthru
      _
    %p139 = scmp.le.s32.totalorder 1, %s8
    %p140 = scmp.lt.s32.totalorder %s8, 3
    %p141 = pnand %p139, %p140
    %p142 = pneg %p141
    // Predicated region
    $region25: #{matching_loss.1} parent=5 // pred_check
      _
    $region26: #{matching_loss.1} parent=5 // pred_check_branch
      %144 = sbr.rel (%p141) target = $region28
    $region27: #{matching_loss.1} parent=5 // pred_region
      %s145 = ssub.s32 %s8, 1
      %s146 = sadd.s32 %s17, %s18
      %p147 = scmp.lt.s32.totalorder %s146, 1
      %s148 = scalar_select %p147, %s146, 1
      %s149 = smul.addr %s148, 8
      %s150 = scalar_lea.vmem %s0, %s149
      %p151 = pneg %p48
      %p152 = pneg %p45
      %s153 = sadd.s32 %s17, %s18
      %p154 = scmp.lt.s32.totalorder %s153, 1
      %s155 = scalar_select %p154, %s153, 1
      %s156 = smul.addr %s155, 8
      %s157 = scalar_lea.vmem %s1, %s156
      %p158 = pneg %p76
      %p159 = pneg %p73
      %p160 = pneg %p102
      %p161 = pneg %p99
      %p162 = scmp.lt.s32.totalorder %s17, 1
      %s163 = scalar_select %p162, %s17, 1
      %s164 = smul.addr %s163, 8
      %s165 = scalar_lea.vmem %s2, %s164
      %s166 = sadd.s32 %s17, %s18
      %p167 = scmp.lt.s32.totalorder %s166, 1
      %s168 = scalar_select %p167, %s166, 1
      %s169 = smul.addr %s168, 8
      %s170 = scalar_lea.vmem %s0, %s169
      %s171 = sadd.s32 %s17, %s18
      %s172 = sadd.s32 %s17, %s18
      %p173 = scmp.lt.s32.totalorder %s172, 1
      %s174 = scalar_select %p173, %s172, 1
      %s175 = smul.addr %s174, 8
      %s176 = scalar_lea.vmem %s1, %s175
      %s177 = sadd.s32 %s17, %s18
      %p178 = scmp.lt.s32.totalorder %s17, 1
      %s179 = scalar_select %p178, %s17, 1
      %s180 = smul.addr %s179, 8
      %s181 = scalar_lea.vmem %s2, %s180
      %p182 = scmp.eq.s32.totalorder %s18, 0
      // Predicated region
      $region29: #{matching_loss.1} parent=27 // pred_check
        %p183 = pneg %p182
      $region30: #{matching_loss.1} parent=27 // pred_check_branch
        %185 = sbr.rel (%p183) target = $region32
      $region31: #{matching_loss.1} parent=27 // pred_region
        %186 = vst [vmem:[#allocation2] sm:$0xff] 0.0
      $region32: #{matching_loss.1} parent=27 // pred_fallthru
        _
      %v187 = vld [vmem:[%s170] sm:$0xff]
      %v188 = vld [vmem:[%s176] sm:$0xff]
      %v189 = vsub.f32 %v187, %v188
      %v190 = vld [vmem:[#allocation2] sm:$0xff]
      %v191 = vmul.f32 %v189, %v189
      %v192 = vadd.f32 %v190, %v191
      %193 = vst [vmem:[#allocation2] sm:$0xff] %v192
      // Predicated region
      $region33: #{matching_loss.1} parent=27 // pred_check
        %p194 = pneg %p182
      $region34: #{matching_loss.1} parent=27 // pred_check_branch
        %196 = sbr.rel (%p194) target = $region36
      $region35: #{matching_loss.1} parent=27 // pred_region
        %v197 = vld [vmem:[#allocation2] sm:$0xff]
        %198 = vadd.xlane.f32.xlu0 %v197
        %v199 = vpop.xlane.xlu0 %198
        %v200 = vrot.slane %v199, 4
        %v201 = vadd.f32 %v199, %v200
        %v202 = vrot.slane %v201, 2
        %v203 = vadd.f32 %v201, %v202
        %v204 = vrot.slane %v203, 1
        %v205 = vadd.f32 %v203, %v204
        %s206 = vtos %v205
        %v207 = vstv %s206
        %208 = vst [vmem:[%s181] sm:$0xff] %v207
      $region36: #{matching_loss.1} parent=27 // pred_fallthru
        _
      %p209 = scmp.lt.s32.totalorder %s17, 1
      %s210 = scalar_select %p209, %s17, 1
      %s211 = smul.addr %s210, 8
      %s212 = scalar_lea.vmem %s2, %s211
      // Predicated region
      $region37: #{matching_loss.1} parent=27 // pred_check
        %p213 = pneg %p99
      $region38: #{matching_loss.1} parent=27 // pred_check_branch
        %215 = sbr.rel (%p213) target = $region40
      $region39: #{matching_loss.1} parent=27 // pred_region
        _
      $region40: #{matching_loss.1} parent=27 // pred_fallthru
        _
    $region28: #{matching_loss.1} parent=5 // pred_fallthru
      _
    %p216 = scmp.le.s32.totalorder 2, %s8
    // Predicated region
    $region41: #{matching_loss.1} parent=5 // pred_check
      %p217 = pneg %p216
    $region42: #{matching_loss.1} parent=5 // pred_check_branch
      %219 = sbr.rel (%p217) target = $region44
    $region43: #{matching_loss.1} parent=5 // pred_region
      %s220 = ssub.s32 %s8, 2
      // Predicated region
      $region45: #{matching_loss.1} parent=43 // pred_check
        %p221 = pneg %p105
      $region46: #{matching_loss.1} parent=43 // pred_check_branch
        %223 = sbr.rel (%p221) target = $region48
      $region47: #{matching_loss.1} parent=43 // pred_region
        %p224 = scmp.lt.s32.totalorder %s19, 1
        %s225 = scalar_select %p224, %s19, 1
        %s226 = smul.addr %s225, 8
        %s227 = scalar_lea.vmem %s2, %s226
      $region48: #{matching_loss.1} parent=43 // pred_fallthru
        _
    $region44: #{matching_loss.1} parent=5 // pred_fallthru
      _
  $region6: #{matching_loss.1} parent=0 // loop_footer
    %s12 = sadd.s32 1, %s8
  $region7: #{matching_loss.1} parent=0 // loop_footer_branch
    %7 = sbr.rel target = $region3
  $region8: #{matching_loss.1} parent=0 // loop_exit
    _

</llo_original>
